<compile_context>
chip_gen: v6e
topology: v6e:2x2x1
jax: 0.10.0
libtpu: 0.0.40
codegen_flags: <defaults>
</compile_context>

<pallas_src>
from functools import partial

import jax
import jax.numpy as jnp
from jax.experimental import pallas as pl
from jax.experimental.pallas import tpu as pltpu

EPS = 1e-5
LANE = 128                        # N and K are zero-padded to multiples of this
VMEM_LIMIT = 32 * 1024 * 1024     # safe scoped-VMEM budget on v5e/v6e/v7x
VMEM_BUDGET = 24 * 1024 * 1024    # tile-sizing budget, headroom under the limit


def _round_up(x, m):
    return (x + m - 1) // m * m


# ----------------------------- Pallas kernels ------------------------------ #

def _matmul_bias_kernel(p_ref, w_ref, b_ref, o_ref, *, relu):
    """out = P @ W + bias  [optional ReLU].  BN scale is pre-folded into W."""
    out = jnp.dot(p_ref[...], w_ref[...], preferred_element_type=jnp.float32)
    out = out + b_ref[...]
    if relu:
        out = jnp.maximum(out, 0.0)
    o_ref[...] = out.astype(o_ref.dtype)


def _matmul_bias_add_relu_kernel(p_ref, w_ref, b_ref, sc_ref, o_ref):
    """out = relu(P @ W + bias + shortcut)   (identity shortcut, f32 add)."""
    out = jnp.dot(p_ref[...], w_ref[...], preferred_element_type=jnp.float32)
    out = out + b_ref[...] + sc_ref[...].astype(jnp.float32)
    o_ref[...] = jnp.maximum(out, 0.0).astype(o_ref.dtype)


# --------------------------- pallas_call builders --------------------------- #

def _compiler_params():
    return pltpu.CompilerParams(
        dimension_semantics=("parallel", "parallel"),
        vmem_limit_bytes=VMEM_LIMIT)


def _specs(tm, tn, k_pad):
    # Grid is (N_tiles, M_tiles): N outermost, so the weight/bias block index
    # is constant across the inner M sweep -> DMA'd once per N tile.
    p_spec = pl.BlockSpec((tm, k_pad), lambda j, i: (i, 0))
    w_spec = pl.BlockSpec((k_pad, tn), lambda j, i: (0, j))
    b_spec = pl.BlockSpec((1, tn), lambda j, i: (0, j))
    o_spec = pl.BlockSpec((tm, tn), lambda j, i: (i, j))
    return p_spec, w_spec, b_spec, o_spec


def conv_bias_matmul(patches, w, bias, *, relu, tm, out_dtype):
    m_pad, k_pad = patches.shape
    n_pad = w.shape[1]
    tn = n_pad if n_pad <= 256 else 256
    p_spec, w_spec, b_spec, o_spec = _specs(tm, tn, k_pad)
    cost = pl.CostEstimate(
        flops=2 * m_pad * n_pad * k_pad, transcendentals=0,
        bytes_accessed=(patches.size * patches.dtype.itemsize
                        + w.size * w.dtype.itemsize
                        + m_pad * n_pad * jnp.dtype(out_dtype).itemsize))
    return pl.pallas_call(
        partial(_matmul_bias_kernel, relu=relu),
        out_shape=jax.ShapeDtypeStruct((m_pad, n_pad), out_dtype),
        grid_spec=pltpu.PrefetchScalarGridSpec(
            num_scalar_prefetch=0,
            grid=(n_pad // tn, m_pad // tm),
            in_specs=[p_spec, w_spec, b_spec],
            out_specs=o_spec),
        compiler_params=_compiler_params(),
        cost_estimate=cost,
    )(patches, w, bias)


def conv_bias_add_relu_matmul(patches, w, bias, sc, *, tm, out_dtype):
    m_pad, k_pad = patches.shape
    n_pad = w.shape[1]
    tn = n_pad if n_pad <= 256 else 256
    p_spec, w_spec, b_spec, o_spec = _specs(tm, tn, k_pad)
    sc_spec = pl.BlockSpec((tm, tn), lambda j, i: (i, j))
    cost = pl.CostEstimate(
        flops=2 * m_pad * n_pad * k_pad, transcendentals=0,
        bytes_accessed=(patches.size * patches.dtype.itemsize
                        + w.size * w.dtype.itemsize
                        + sc.size * sc.dtype.itemsize
                        + m_pad * n_pad * jnp.dtype(out_dtype).itemsize))
    return pl.pallas_call(
        _matmul_bias_add_relu_kernel,
        out_shape=jax.ShapeDtypeStruct((m_pad, n_pad), out_dtype),
        grid_spec=pltpu.PrefetchScalarGridSpec(
            num_scalar_prefetch=0,
            grid=(n_pad // tn, m_pad // tm),
            in_specs=[p_spec, w_spec, b_spec, sc_spec],
            out_specs=o_spec),
        compiler_params=_compiler_params(),
        cost_estimate=cost,
    )(patches, w, bias, sc)


# ------------------------- parameter packing (hoisted) ----------------------- #

def _fold_bn(bn):
    gamma, beta, mean, var = bn
    scale = gamma / jnp.sqrt(var + EPS)
    bias = beta - mean * scale
    return scale, bias


def _w_oihw_to_mat(w):
    """(Cout, Cin, Kh, Kw) -> (Kh*Kw*Cin, Cout), matching im2col [ky,kx,ci]."""
    cout, cin, kh, kw = w.shape
    return jnp.transpose(w, (2, 3, 1, 0)).reshape(kh * kw * cin, cout)


def _pad2d(a, rows, cols):
    return jnp.pad(a, ((0, rows - a.shape[0]), (0, cols - a.shape[1])))


def prepare_block_params(params, *, compute_dtype=jnp.bfloat16):
    """Fold BN scale into weights (f32, then cast), pack/pad once (hoisted)."""
    cout = params["w1"].shape[0]
    n_pad = _round_up(cout, LANE)

    def pack_w(w, scale):
        wm = _w_oihw_to_mat(w) * scale[None, :]          # fold BN scale in f32
        k_pad = _round_up(wm.shape[0], LANE)
        return _pad2d(wm, k_pad, n_pad).astype(compute_dtype)

    def pack_b(b):
        return jnp.pad(b, (0, n_pad - cout)).reshape(1, n_pad).astype(jnp.float32)

    s1, b1 = _fold_bn(params["bn1"])
    s2, b2 = _fold_bn(params["bn2"])

    prepped = {"w1": pack_w(params["w1"], s1), "b1": pack_b(b1)}
    if "ws" in params:                                   # projection shortcut
        ss, bs = _fold_bn(params["bns"])
        w2 = pack_w(params["w2"], s2)                    # (k2_pad, n_pad)
        ws = pack_w(params["ws"], ss)                    # (ks_pad, n_pad), 1x1
        prepped["w2cat"] = jnp.concatenate([w2, ws], axis=0)
        prepped["b2"] = pack_b(b2 + bs)                  # combined BN bias
    else:                                                # identity shortcut
        prepped["w2"] = pack_w(params["w2"], s2)
        prepped["b2"] = pack_b(b2)
    return prepped


# ------------------------------- forward glue -------------------------------- #

def _im2col3x3(xp, stride, dtype):
    """3x3 patches of an already-padded NHWC tensor -> (B*Ho*Wo, 9*C)."""
    B, Hp, Wp, C = xp.shape
    Ho = (Hp - 3) // stride + 1
    Wo = (Wp - 3) // stride + 1
    cols = []
    for ky in range(3):
        for kx in range(3):
            cols.append(xp[:, ky:ky + stride * (Ho - 1) + 1:stride,
                           kx:kx + stride * (Wo - 1) + 1:stride, :])
    patches = jnp.concatenate(cols, axis=-1)             # order [ky,kx,ci]
    return patches.reshape(B * Ho * Wo, 9 * C).astype(dtype), Ho, Wo


def _pick_tm(M, k_pad, tn, itemsize):
    """VMEM-aware, 256-aligned tm; >=2 M-tiles when M allows (v7x megacore)."""
    if M <= 256:
        return _round_up(M, 8)
    weight_bytes = 2 * k_pad * tn * itemsize                 # double-buffered W
    per_row = 2 * k_pad * itemsize + 3 * tn * 4              # 2x patches + out/sc
    avail = max(VMEM_BUDGET - weight_bytes, per_row * 256)
    cap = max(256, (avail // per_row) // 256 * 256)
    return min(1024, cap, max(256, _round_up(_round_up(M, 512) // 2, 256)))


def basic_block_forward(x_nchw, prepped, *, stride, planes):
    cdt = prepped["w1"].dtype                                # matmul operand dtype
    n_pad = prepped["w1"].shape[1]
    x = jnp.transpose(x_nchw, (0, 2, 3, 1))                  # NHWC
    B, H, W, cin = x.shape
    cout = planes
    has_proj = "w2cat" in prepped

    k1_pad = prepped["w1"].shape[0]
    k2_tot = prepped["w2cat"].shape[0] if has_proj else prepped["w2"].shape[0]

    # ---- conv1 (3x3, stride, pad=1) + bn1 + relu ----
    xp = jnp.pad(x, ((0, 0), (1, 1), (1, 1), (0, 0)))
    p1, Ho, Wo = _im2col3x3(xp, stride, cdt)
    M = B * Ho * Wo
    tm = _pick_tm(M, max(k1_pad, k2_tot),
                  n_pad if n_pad <= 256 else 256, jnp.dtype(cdt).itemsize)
    m_pad = _round_up(M, tm)
    p1 = _pad2d(p1, m_pad, k1_pad)
    # conv1 output stays in the compute dtype to halve the intermediate HBM I/O
    out1 = conv_bias_matmul(p1, prepped["w1"], prepped["b1"],
                            relu=True, tm=tm, out_dtype=cdt)
    out1_img = out1[:M, :cout].reshape(B, Ho, Wo, cout)

    # ---- conv2 (3x3, stride 1, pad=1) + bn2 + shortcut + relu (fully fused) ----
    out1p = jnp.pad(out1_img, ((0, 0), (1, 1), (1, 1), (0, 0)))
    p2, _, _ = _im2col3x3(out1p, 1, cdt)                     # (M, 9*cout)
    k2_pad = _round_up(9 * cout, LANE)

    if has_proj:
        # 1x1 projection shortcut fused into the same matmul: concat along K.
        ks_pad = k2_tot - k2_pad
        xs = x[:, ::stride, ::stride, :].reshape(M, cin).astype(cdt)
        pcat = jnp.concatenate([_pad2d(p2, M, k2_pad), _pad2d(xs, M, ks_pad)],
                               axis=1)
        pcat = _pad2d(pcat, m_pad, k2_tot)
        out = conv_bias_matmul(pcat, prepped["w2cat"], prepped["b2"],
                               relu=True, tm=tm, out_dtype=jnp.float32)
    else:
        # identity shortcut (stride == 1, cin == cout), added in-kernel in f32;
        # streamed in the compute dtype to halve its HBM read.
        p2 = _pad2d(p2, m_pad, k2_pad)
        sc = _pad2d(x.reshape(M, cin).astype(cdt), m_pad, n_pad)
        out = conv_bias_add_relu_matmul(p2, prepped["w2"], prepped["b2"], sc,
                                        tm=tm, out_dtype=jnp.float32)

    out = out[:M, :cout].reshape(B, Ho, Wo, cout)
    return jnp.transpose(out, (0, 3, 1, 2))                  # back to NCHW


# --------------------------- pure-JAX reference ------------------------------ #

def _ref_forward(x, params, stride):
    def conv(x, w, s, pad):
        return jax.lax.conv_general_dilated(
            x, w, (s, s), [(pad, pad), (pad, pad)],
            dimension_numbers=("NCHW", "OIHW", "NCHW"))

    def bn(x, p):
        g, b, m, v = p
        sc = (g / jnp.sqrt(v + EPS))[None, :, None, None]
        return (x - m[None, :, None, None]) * sc + b[None, :, None, None]

    out = jax.nn.relu(bn(conv(x, params["w1"], stride, 1), params["bn1"]))
    out = bn(conv(out, params["w2"], 1, 1), params["bn2"])
    if "ws" in params:
        sc = bn(conv(x, params["ws"], stride, 0), params["bns"])
    else:
        sc = x
    return jax.nn.relu(out + sc)


# ---------------------------------- main -------------------------------------- #

def _init_bn(key, planes):
    k1, k2, k3, k4 = jax.random.split(key, 4)
    gamma = jax.random.uniform(k1, (planes,), jnp.float32, 0.5, 1.5)
    beta = 0.1 * jax.random.normal(k2, (planes,), jnp.float32)
    mean = 0.1 * jax.random.normal(k3, (planes,), jnp.float32)
    var = jax.random.uniform(k4, (planes,), jnp.float32, 0.5, 1.5)
    return (gamma, beta, mean, var)


def _make_params(key, in_planes, planes, with_proj):
    kw1, kw2, kws, kb1, kb2, kbs = jax.random.split(key, 6)
    params = {
        "w1": 0.1 * jax.random.normal(kw1, (planes, in_planes, 3, 3), jnp.float32),
        "w2": 0.1 * jax.random.normal(kw2, (planes, planes, 3, 3), jnp.float32),
        "bn1": _init_bn(kb1, planes),
        "bn2": _init_bn(kb2, planes),
    }
    if with_proj:
        params["ws"] = 0.1 * jax.random.normal(
            kws, (planes, in_planes, 1, 1), jnp.float32)
        params["bns"] = _init_bn(kbs, planes)
    return params


if __name__ == "__main__":
    key = jax.random.PRNGKey(0)
    kx1, kp1, kx2, kp2 = jax.random.split(key, 4)

    forward = jax.jit(basic_block_forward, static_argnames=("stride", "planes"))

    # --- case 1: projection shortcut (stride=2, 4 -> 8 channels), f32 matmuls ---
    B, in_planes, planes, H, W, stride = 2, 4, 8, 16, 16, 2
    x = jax.random.normal(kx1, (B, in_planes, H, W), jnp.float32)
    params = _make_params(kp1, in_planes, planes, with_proj=True)
    prepped = prepare_block_params(params, compute_dtype=jnp.float32)
    out = jax.block_until_ready(forward(x, prepped, stride=stride, planes=planes))
    ref = _ref_forward(x, params, stride)
    assert out.shape == ref.shape == (B, planes, H // stride, W // stride)
    assert jnp.allclose(out, ref, atol=1e-4, rtol=1e-4), "projection/f32 mismatch"

    # --- case 2: identity shortcut (stride=1, 8 -> 8 channels), f32 matmuls ---
    B2, in_planes2, planes2, stride2 = 2, 8, 8, 1
    x2 = jax.random.normal(kx2, (B2, in_planes2, H, W), jnp.float32)
    params2 = _make_params(kp2, in_planes2, planes2, with_proj=False)
    prepped2 = prepare_block_params(params2, compute_dtype=jnp.float32)
    out2 = jax.block_until_ready(
        forward(x2, prepped2, stride=stride2, planes=planes2))
    ref2 = _ref_forward(x2, params2, stride2)
    assert out2.shape == ref2.shape == (B2, planes2, H, W)
    assert jnp.allclose(out2, ref2, atol=1e-4, rtol=1e-4), "identity/f32 mismatch"

    # --- case 3: default bf16 operands, f32 accumulate/epilogue (v6e/v7x MXU) ---
    prepped_bf16 = prepare_block_params(params)              # bf16 by default
    out3 = jax.block_until_ready(
        forward(x, prepped_bf16, stride=stride, planes=planes))
    assert jnp.allclose(out3, ref, atol=5e-2, rtol=5e-2), "projection/bf16 mismatch"

    prepped2_bf16 = prepare_block_params(params2)
    out4 = jax.block_until_ready(
        forward(x2, prepped2_bf16, stride=stride2, planes=planes2))
    assert jnp.allclose(out4, ref2, atol=5e-2, rtol=5e-2), "identity/bf16 mismatch"

    print("KERNEL_OK")
</pallas_src>

<mosaic_0001>
module attributes {stable_mosaic.version = 11 : i64} {
  func.func @_matmul_bias_kernel(%arg0: i32, %arg1: i32, %arg2: memref<128x128xf32, #tpu.memory_space<vmem>>, %arg3: memref<128x128xf32, #tpu.memory_space<vmem>>, %arg4: memref<1x128xf32, #tpu.memory_space<vmem>>, %arg5: memref<128x128xf32, #tpu.memory_space<vmem>>) attributes {dimension_semantics = [#tpu.dimension_semantics<parallel>, #tpu.dimension_semantics<parallel>], iteration_bounds = array<i64: 1, 1>, scalar_prefetch = 0 : i64, scratch_operands = 0 : i64, tpu.core_type = #tpu.core_type<tc>, window_params = [{transform_indices = @transform_0, window_bounds = array<i64: 128, 128>}, {transform_indices = @transform_1, window_bounds = array<i64: 128, 128>}, {transform_indices = @transform_2, window_bounds = array<i64: 1, 128>}, {transform_indices = @transform_3, window_bounds = array<i64: 128, 128>}]} {
    %c0 = arith.constant 0 : index
    %c0_0 = arith.constant 0 : index
    %0 = vector.load %arg2[%c0, %c0_0] : memref<128x128xf32, #tpu.memory_space<vmem>>, vector<128x128xf32>
    %c0_1 = arith.constant 0 : index
    %c0_2 = arith.constant 0 : index
    %1 = vector.load %arg3[%c0_1, %c0_2] : memref<128x128xf32, #tpu.memory_space<vmem>>, vector<128x128xf32>
    %cst = arith.constant dense<0.000000e+00> : vector<128x128xf32>
    %2 = tpu.matmul %0, %1, %cst {dimension_numbers = #tpu.dot_dimension_numbers<[1], [0], [0], [1], [0, 0, 1, 1], [], []>} : vector<128x128xf32>, vector<128x128xf32>, vector<128x128xf32> -> vector<128x128xf32>
    %c0_3 = arith.constant 0 : index
    %c0_4 = arith.constant 0 : index
    %3 = vector.load %arg4[%c0_3, %c0_4] : memref<1x128xf32, #tpu.memory_space<vmem>>, vector<1x128xf32>
    %4 = vector.broadcast %3 : vector<1x128xf32> to vector<128x128xf32>
    %5 = arith.addf %2, %4 : vector<128x128xf32>
    %cst_5 = arith.constant 0.000000e+00 : f32
    %6 = vector.broadcast %cst_5 : f32 to vector<128x128xf32>
    %7 = arith.maximumf %5, %6 : vector<128x128xf32>
    %c0_6 = arith.constant 0 : index
    %c0_7 = arith.constant 0 : index
    %8 = vector.load %arg5[%c0_6, %c0_7] : memref<128x128xf32, #tpu.memory_space<vmem>>, vector<128x128xf32>
    tpu.vector_store %arg5[%c0_6, %c0_7], %7 {strides = array<i32>} : memref<128x128xf32, #tpu.memory_space<vmem>>, vector<128x128xf32>,
    return
  }
  func.func @transform_0(%arg0: i32, %arg1: i32) -> (i32, i32) {
    %c0_i32 = arith.constant 0 : i32
    %c0_i32_0 = arith.constant 0 : i32
    return %arg1, %c0_i32 : i32, i32
  }
  func.func @transform_1(%arg0: i32, %arg1: i32) -> (i32, i32) {
    %c0_i32 = arith.constant 0 : i32
    %c0_i32_0 = arith.constant 0 : i32
    return %c0_i32, %arg0 : i32, i32
  }
  func.func @transform_2(%arg0: i32, %arg1: i32) -> (i32, i32) {
    %c0_i32 = arith.constant 0 : i32
    %c0_i32_0 = arith.constant 0 : i32
    return %c0_i32, %arg0 : i32, i32
  }
  func.func @transform_3(%arg0: i32, %arg1: i32) -> (i32, i32) {
    %c0_i32 = arith.constant 0 : i32
    return %arg1, %arg0 : i32, i32
  }
}

module attributes {stable_mosaic.version = 11 : i64} {
  func.func @_matmul_bias_kernel(%arg0: i32, %arg1: i32, %arg2: memref<128x256xf32, #tpu.memory_space<vmem>>, %arg3: memref<256x128xf32, #tpu.memory_space<vmem>>, %arg4: memref<1x128xf32, #tpu.memory_space<vmem>>, %arg5: memref<128x128xf32, #tpu.memory_space<vmem>>) attributes {dimension_semantics = [#tpu.dimension_semantics<parallel>, #tpu.dimension_semantics<parallel>], iteration_bounds = array<i64: 1, 1>, scalar_prefetch = 0 : i64, scratch_operands = 0 : i64, tpu.core_type = #tpu.core_type<tc>, window_params = [{transform_indices = @transform_0, window_bounds = array<i64: 128, 256>}, {transform_indices = @transform_1, window_bounds = array<i64: 256, 128>}, {transform_indices = @transform_2, window_bounds = array<i64: 1, 128>}, {transform_indices = @transform_3, window_bounds = array<i64: 128, 128>}]} {
    %c0 = arith.constant 0 : index
    %c0_0 = arith.constant 0 : index
    %0 = vector.load %arg2[%c0, %c0_0] : memref<128x256xf32, #tpu.memory_space<vmem>>, vector<128x256xf32>
    %c0_1 = arith.constant 0 : index
    %c0_2 = arith.constant 0 : index
    %1 = vector.load %arg3[%c0_1, %c0_2] : memref<256x128xf32, #tpu.memory_space<vmem>>, vector<256x128xf32>
    %cst = arith.constant dense<0.000000e+00> : vector<128x128xf32>
    %2 = tpu.matmul %0, %1, %cst {dimension_numbers = #tpu.dot_dimension_numbers<[1], [0], [0], [1], [0, 0, 1, 1], [], []>} : vector<128x256xf32>, vector<256x128xf32>, vector<128x128xf32> -> vector<128x128xf32>
    %c0_3 = arith.constant 0 : index
    %c0_4 = arith.constant 0 : index
    %3 = vector.load %arg4[%c0_3, %c0_4] : memref<1x128xf32, #tpu.memory_space<vmem>>, vector<1x128xf32>
    %4 = vector.broadcast %3 : vector<1x128xf32> to vector<128x128xf32>
    %5 = arith.addf %2, %4 : vector<128x128xf32>
    %cst_5 = arith.constant 0.000000e+00 : f32
    %6 = vector.broadcast %cst_5 : f32 to vector<128x128xf32>
    %7 = arith.maximumf %5, %6 : vector<128x128xf32>
    %c0_6 = arith.constant 0 : index
    %c0_7 = arith.constant 0 : index
    %8 = vector.load %arg5[%c0_6, %c0_7] : memref<128x128xf32, #tpu.memory_space<vmem>>, vector<128x128xf32>
    tpu.vector_store %arg5[%c0_6, %c0_7], %7 {strides = array<i32>} : memref<128x128xf32, #tpu.memory_space<vmem>>, vector<128x128xf32>,
    return
  }
  func.func @transform_0(%arg0: i32, %arg1: i32) -> (i32, i32) {
    %c0_i32 = arith.constant 0 : i32
    %c0_i32_0 = arith.constant 0 : i32
    return %arg1, %c0_i32 : i32, i32
  }
  func.func @transform_1(%arg0: i32, %arg1: i32) -> (i32, i32) {
    %c0_i32 = arith.constant 0 : i32
    %c0_i32_0 = arith.constant 0 : i32
    return %c0_i32, %arg0 : i32, i32
  }
  func.func @transform_2(%arg0: i32, %arg1: i32) -> (i32, i32) {
    %c0_i32 = arith.constant 0 : i32
    %c0_i32_0 = arith.constant 0 : i32
    return %c0_i32, %arg0 : i32, i32
  }
  func.func @transform_3(%arg0: i32, %arg1: i32) -> (i32, i32) {
    %c0_i32 = arith.constant 0 : i32
    return %arg1, %arg0 : i32, i32
  }
}

</mosaic_0001>

<llo_original>
// kernel: basic_block_forward.2
$region0: #{basic_block_forward.2}
  #allocation0 [shape = 'u32[]', space=smem, size = 0x4, offset = 0x4, fixed_abs, tag = 'smem constant byte address 0x4 - core index']
  #allocation1 [shape = 'u32[144,128]{1,0:T(1,128)}', space=vmem, size = 0x12000, scoped, tag = 'internal scratch']
  %s0 = inlined_call_operand.vmem [shape: f32[128,128], index: 0, kind: input, shape index: {}]
  %s1 = inlined_call_operand.vmem [shape: f32[128,128], index: 1, kind: input, shape index: {}]
  %s2 = inlined_call_operand.vmem [shape: f32[1,128], index: 2, kind: input, shape index: {}]
  %s3 = inlined_call_operand.vmem [shape: f32[128,128], index: 3, kind: output, shape index: {}]
  %s4 = sld [smem:[#allocation0]]
  $region22: #{basic_block_forward.2} parent=0
    _
  %s6 = ssub.s32 1, %s4
  %s7 = scalar_select 0, %s6, %s4
  // Predicated region
  $region2: #{basic_block_forward.2} parent=0 // pred_check
    _
  $region3: #{basic_block_forward.2} parent=0 // pred_check_branch
    %9 = sbr.rel (0) target = $region5
  $region4: #{basic_block_forward.2} parent=0 // pred_region
    _
  $region5: #{basic_block_forward.2} parent=0 // pred_fallthru
    _
  // Predicated region
  $region6: #{basic_block_forward.2} parent=0 // pred_check
    _
  $region7: #{basic_block_forward.2} parent=0 // pred_check_branch
    %11 = sbr.rel (0) target = $region9
  $region8: #{basic_block_forward.2} parent=0 // pred_region
    _
  $region9: #{basic_block_forward.2} parent=0 // pred_fallthru
    _
  // Predicated region
  $region10: #{basic_block_forward.2} parent=0 // pred_check
    _
  $region11: #{basic_block_forward.2} parent=0 // pred_check_branch
    %13 = sbr.rel (0) target = $region13
  $region12: #{basic_block_forward.2} parent=0 // pred_region
    _
  $region13: #{basic_block_forward.2} parent=0 // pred_fallthru
    _
  %v14 = vld [vmem:[%s0] sm:$0xff]
  %v15 = vld [vmem:[%s0 + $0x8] sm:$0xff]
  %v16 = vld [vmem:[%s0 + $0x10] sm:$0xff]
  %v17 = vld [vmem:[%s0 + $0x18] sm:$0xff]
  %v18 = vld [vmem:[%s0 + $0x20] sm:$0xff]
  %v19 = vld [vmem:[%s0 + $0x28] sm:$0xff]
  %v20 = vld [vmem:[%s0 + $0x30] sm:$0xff]
  %v21 = vld [vmem:[%s0 + $0x38] sm:$0xff]
  %v22 = vld [vmem:[%s0 + $0x40] sm:$0xff]
  %v23 = vld [vmem:[%s0 + $0x48] sm:$0xff]
  %v24 = vld [vmem:[%s0 + $0x50] sm:$0xff]
  %v25 = vld [vmem:[%s0 + $0x58] sm:$0xff]
  %v26 = vld [vmem:[%s0 + $0x60] sm:$0xff]
  %v27 = vld [vmem:[%s0 + $0x68] sm:$0xff]
  %v28 = vld [vmem:[%s0 + $0x70] sm:$0xff]
  %v29 = vld [vmem:[%s0 + $0x78] sm:$0xff]
  %v30 = vld [vmem:[%s1] sm:$0xff]
  %v31 = vld [vmem:[%s1 + $0x8] sm:$0xff]
  %v32 = vld [vmem:[%s1 + $0x10] sm:$0xff]
  %v33 = vld [vmem:[%s1 + $0x18] sm:$0xff]
  %v34 = vld [vmem:[%s1 + $0x20] sm:$0xff]
  %v35 = vld [vmem:[%s1 + $0x28] sm:$0xff]
  %v36 = vld [vmem:[%s1 + $0x30] sm:$0xff]
  %v37 = vld [vmem:[%s1 + $0x38] sm:$0xff]
  %v38 = vld [vmem:[%s1 + $0x40] sm:$0xff]
  %v39 = vld [vmem:[%s1 + $0x48] sm:$0xff]
  %v40 = vld [vmem:[%s1 + $0x50] sm:$0xff]
  %v41 = vld [vmem:[%s1 + $0x58] sm:$0xff]
  %v42 = vld [vmem:[%s1 + $0x60] sm:$0xff]
  %v43 = vld [vmem:[%s1 + $0x68] sm:$0xff]
  %v44 = vld [vmem:[%s1 + $0x70] sm:$0xff]
  %v45 = vld [vmem:[%s1 + $0x78] sm:$0xff]
  %v46 = vld [vmem:[%s2] sm:$0x1]
  %v48 = vlaneseq
  %v49 = vshrl.u32 %v48, 7
  %v50 = vsub.s32 0, %v49
  %v51 = vrot.slane %v46, %v50
  %53 = vmatprep.subr.mxu0 0.0
  %54 = vmatpush1.msra.mxu0 %v45
  %55 = vmatprep.subr.mxu0 0.0
  %56 = vmatpush1.msra.mxu0 %v44
  %57 = vmatprep.subr.mxu0 0.0
  %58 = vmatpush1.msra.mxu0 %v43
  %59 = vmatprep.subr.mxu0 0.0
  %60 = vmatpush1.msra.mxu0 %v42
  %61 = vmatprep.subr.mxu0 0.0
  %62 = vmatpush1.msra.mxu0 %v41
  %63 = vmatprep.subr.mxu0 0.0
  %64 = vmatpush1.msra.mxu0 %v40
  %65 = vmatprep.subr.mxu0 0.0
  %66 = vmatpush1.msra.mxu0 %v39
  %67 = vmatprep.subr.mxu0 0.0
  %68 = vmatpush1.msra.mxu0 %v38
  %69 = vmatprep.subr.mxu0 0.0
  %70 = vmatpush1.msra.mxu0 %v37
  %71 = vmatprep.subr.mxu0 0.0
  %72 = vmatpush1.msra.mxu0 %v36
  %73 = vmatprep.subr.mxu0 0.0
  %74 = vmatpush1.msra.mxu0 %v35
  %75 = vmatprep.subr.mxu0 0.0
  %76 = vmatpush1.msra.mxu0 %v34
  %77 = vmatprep.subr.mxu0 0.0
  %78 = vmatpush1.msra.mxu0 %v33
  %79 = vmatprep.subr.mxu0 0.0
  %80 = vmatpush1.msra.mxu0 %v32
  %81 = vmatprep.subr.mxu0 0.0
  %82 = vmatpush1.msra.mxu0 %v31
  %83 = vmatprep.subr.mxu0 0.0
  %84 = vmatpush1.msra.mxu0 %v30
  %85 = vmatprep.subr.mxu0 0.0
  %86 = vmatpush2.msra.mxu0 0.0
  %87 = vmatprep.subr.mxu0 0.0
  %88 = vmatpush2.msra.mxu0 0.0
  %89 = vmatprep.subr.mxu0 0.0
  %90 = vmatpush2.msra.mxu0 0.0
  %91 = vmatprep.subr.mxu0 0.0
  %92 = vmatpush2.msra.mxu0 0.0
  %93 = vmatprep.subr.mxu0 0.0
  %94 = vmatpush2.msra.mxu0 0.0
  %95 = vmatprep.subr.mxu0 0.0
  %96 = vmatpush2.msra.mxu0 0.0
  %97 = vmatprep.subr.mxu0 0.0
  %98 = vmatpush2.msra.mxu0 0.0
  %99 = vmatprep.subr.mxu0 0.0
  %100 = vmatpush2.msra.mxu0 0.0
  %101 = vmatprep.subr.mxu0 0.0
  %102 = vmatpush2.msra.mxu0 0.0
  %103 = vmatprep.subr.mxu0 0.0
  %104 = vmatpush2.msra.mxu0 0.0
  %105 = vmatprep.subr.mxu0 0.0
  %106 = vmatpush2.msra.mxu0 0.0
  %107 = vmatprep.subr.mxu0 0.0
  %108 = vmatpush2.msra.mxu0 0.0
  %109 = vmatprep.subr.mxu0 0.0
  %110 = vmatpush2.msra.mxu0 0.0
  %111 = vmatprep.subr.mxu0 0.0
  %112 = vmatpush2.msra.mxu0 0.0
  %113 = vmatprep.subr.mxu0 0.0
  %114 = vmatpush2.msra.mxu0 0.0
  %115 = vmatprep.subr.mxu0 0.0
  %116 = vmatpush2.msra.mxu0 0.0
  %117 = vmatprep.mubr.f32.mxu0 0.0
  %118 = vmatmul.mubr.f32.gmra.mxu0 %v14
  %v119 = vpop.f32.mrf.mxu0
  %v120 = vadd.f32 %v51, %v119
  %v121 = vpop.f32.mrf.mxu0
  %122 = vmatprep.mubr.f32.mxu0 0.0
  %123 = vmatmul.mubr.f32.gmra.mxu0 %v15
  %v124 = vpop.f32.mrf.mxu0
  %v125 = vadd.f32 %v51, %v124
  %v126 = vpop.f32.mrf.mxu0
  %127 = vmatprep.mubr.f32.mxu0 0.0
  %128 = vmatmul.mubr.f32.gmra.mxu0 %v16
  %v129 = vpop.f32.mrf.mxu0
  %v130 = vadd.f32 %v51, %v129
  %v131 = vpop.f32.mrf.mxu0
  %132 = vmatprep.mubr.f32.mxu0 0.0
  %133 = vmatmul.mubr.f32.gmra.mxu0 %v17
  %v134 = vpop.f32.mrf.mxu0
  %v135 = vadd.f32 %v51, %v134
  %v136 = vpop.f32.mrf.mxu0
  %137 = vmatprep.mubr.f32.mxu0 0.0
  %138 = vmatmul.mubr.f32.gmra.mxu0 %v18
  %v139 = vpop.f32.mrf.mxu0
  %v140 = vadd.f32 %v51, %v139
  %v141 = vpop.f32.mrf.mxu0
  %142 = vmatprep.mubr.f32.mxu0 0.0
  %143 = vmatmul.mubr.f32.gmra.mxu0 %v19
  %v144 = vpop.f32.mrf.mxu0
  %v145 = vadd.f32 %v51, %v144
  %v146 = vpop.f32.mrf.mxu0
  %147 = vmatprep.mubr.f32.mxu0 0.0
  %148 = vmatmul.mubr.f32.gmra.mxu0 %v20
  %v149 = vpop.f32.mrf.mxu0
  %v150 = vadd.f32 %v51, %v149
  %v151 = vpop.f32.mrf.mxu0
  %152 = vmatprep.mubr.f32.mxu0 0.0
  %153 = vmatmul.mubr.f32.gmra.mxu0 %v21
  %v154 = vpop.f32.mrf.mxu0
  %v155 = vadd.f32 %v51, %v154
  %v156 = vpop.f32.mrf.mxu0
  %157 = vmatprep.mubr.f32.mxu0 0.0
  %158 = vmatmul.mubr.f32.gmra.mxu0 %v22
  %v159 = vpop.f32.mrf.mxu0
  %v160 = vadd.f32 %v51, %v159
  %v161 = vpop.f32.mrf.mxu0
  %162 = vmatprep.mubr.f32.mxu0 0.0
  %163 = vmatmul.mubr.f32.gmra.mxu0 %v23
  %v164 = vpop.f32.mrf.mxu0
  %v165 = vadd.f32 %v51, %v164
  %v166 = vpop.f32.mrf.mxu0
  %167 = vmatprep.mubr.f32.mxu0 0.0
  %168 = vmatmul.mubr.f32.gmra.mxu0 %v24
  %v169 = vpop.f32.mrf.mxu0
  %v170 = vadd.f32 %v51, %v169
  %v171 = vpop.f32.mrf.mxu0
  %172 = vmatprep.mubr.f32.mxu0 0.0
  %173 = vmatmul.mubr.f32.gmra.mxu0 %v25
  %v174 = vpop.f32.mrf.mxu0
  %v175 = vadd.f32 %v51, %v174
  %v176 = vpop.f32.mrf.mxu0
  %177 = vmatprep.mubr.f32.mxu0 0.0
  %178 = vmatmul.mubr.f32.gmra.mxu0 %v26
  %v179 = vpop.f32.mrf.mxu0
  %v180 = vadd.f32 %v51, %v179
  %v181 = vpop.f32.mrf.mxu0
  %182 = vmatprep.mubr.f32.mxu0 0.0
  %183 = vmatmul.mubr.f32.gmra.mxu0 %v27
  %v184 = vpop.f32.mrf.mxu0
  %v185 = vadd.f32 %v51, %v184
  %v186 = vpop.f32.mrf.mxu0
  %187 = vmatprep.mubr.f32.mxu0 0.0
  %188 = vmatmul.mubr.f32.gmra.mxu0 %v28
  %v189 = vpop.f32.mrf.mxu0
  %v190 = vadd.f32 %v51, %v189
  %v191 = vpop.f32.mrf.mxu0
  %192 = vmatprep.mubr.f32.mxu0 0.0
  %193 = vmatmul.mubr.f32.gmra.mxu0 %v29
  %v194 = vpop.f32.mrf.mxu0
  %v195 = vadd.f32 %v51, %v194
  %v196 = vpop.f32.mrf.mxu0
  %197 = vdwg.mxu0
  %v198 = vmax.f32 %v120, 0.0
  %v199 = vmax.f32 %v125, 0.0
  %v200 = vmax.f32 %v130, 0.0
  %v201 = vmax.f32 %v135, 0.0
  %v202 = vmax.f32 %v140, 0.0
  %v203 = vmax.f32 %v145, 0.0
  %v204 = vmax.f32 %v150, 0.0
  %v205 = vmax.f32 %v155, 0.0
  %v206 = vmax.f32 %v160, 0.0
  %v207 = vmax.f32 %v165, 0.0
  %v208 = vmax.f32 %v170, 0.0
  %v209 = vmax.f32 %v175, 0.0
  %v210 = vmax.f32 %v180, 0.0
  %v211 = vmax.f32 %v185, 0.0
  %v212 = vmax.f32 %v190, 0.0
  %v213 = vmax.f32 %v195, 0.0
  %214 = vst [vmem:[%s3] sm:$0xff] %v198
  %215 = vst [vmem:[%s3 + $0x8] sm:$0xff] %v199
  %216 = vst [vmem:[%s3 + $0x10] sm:$0xff] %v200
  %217 = vst [vmem:[%s3 + $0x18] sm:$0xff] %v201
  %218 = vst [vmem:[%s3 + $0x20] sm:$0xff] %v202
  %219 = vst [vmem:[%s3 + $0x28] sm:$0xff] %v203
  %220 = vst [vmem:[%s3 + $0x30] sm:$0xff] %v204
  %221 = vst [vmem:[%s3 + $0x38] sm:$0xff] %v205
  %222 = vst [vmem:[%s3 + $0x40] sm:$0xff] %v206
  %223 = vst [vmem:[%s3 + $0x48] sm:$0xff] %v207
  %224 = vst [vmem:[%s3 + $0x50] sm:$0xff] %v208
  %225 = vst [vmem:[%s3 + $0x58] sm:$0xff] %v209
  %226 = vst [vmem:[%s3 + $0x60] sm:$0xff] %v210
  %227 = vst [vmem:[%s3 + $0x68] sm:$0xff] %v211
  %228 = vst [vmem:[%s3 + $0x70] sm:$0xff] %v212
  %229 = vst [vmem:[%s3 + $0x78] sm:$0xff] %v213
  // Predicated region
  $region14: #{basic_block_forward.2} parent=0 // pred_check
    _
  $region15: #{basic_block_forward.2} parent=0 // pred_check_branch
    %231 = sbr.rel (0) target = $region17
  $region16: #{basic_block_forward.2} parent=0 // pred_region
    _
  $region17: #{basic_block_forward.2} parent=0 // pred_fallthru
    _
  // Predicated region
  $region18: #{basic_block_forward.2} parent=0 // pred_check
    _
  $region19: #{basic_block_forward.2} parent=0 // pred_check_branch
    %233 = sbr.rel (0) target = $region21
  $region20: #{basic_block_forward.2} parent=0 // pred_region
    _
  $region21: #{basic_block_forward.2} parent=0 // pred_fallthru
    _

// kernel: basic_block_forward.3
$region0: #{basic_block_forward.3}
  #allocation0 [shape = 'u32[]', space=smem, size = 0x4, offset = 0x4, fixed_abs, tag = 'smem constant byte address 0x4 - core index']
  #allocation1 [shape = 'u32[144,128]{1,0:T(1,128)}', space=vmem, size = 0x12000, scoped, tag = 'internal scratch']
  %s0 = inlined_call_operand.vmem [shape: f32[128,256], index: 0, kind: input, shape index: {}]
  %s1 = inlined_call_operand.vmem [shape: f32[256,128], index: 1, kind: input, shape index: {}]
  %s2 = inlined_call_operand.vmem [shape: f32[1,128], index: 2, kind: input, shape index: {}]
  %s3 = inlined_call_operand.vmem [shape: f32[128,128], index: 3, kind: output, shape index: {}]
  %s4 = sld [smem:[#allocation0]]
  $region22: #{basic_block_forward.3} parent=0
    _
  %s6 = ssub.s32 1, %s4
  %s7 = scalar_select 0, %s6, %s4
  // Predicated region
  $region2: #{basic_block_forward.3} parent=0 // pred_check
    _
  $region3: #{basic_block_forward.3} parent=0 // pred_check_branch
    %9 = sbr.rel (0) target = $region5
  $region4: #{basic_block_forward.3} parent=0 // pred_region
    _
  $region5: #{basic_block_forward.3} parent=0 // pred_fallthru
    _
  // Predicated region
  $region6: #{basic_block_forward.3} parent=0 // pred_check
    _
  $region7: #{basic_block_forward.3} parent=0 // pred_check_branch
    %11 = sbr.rel (0) target = $region9
  $region8: #{basic_block_forward.3} parent=0 // pred_region
    _
  $region9: #{basic_block_forward.3} parent=0 // pred_fallthru
    _
  // Predicated region
  $region10: #{basic_block_forward.3} parent=0 // pred_check
    _
  $region11: #{basic_block_forward.3} parent=0 // pred_check_branch
    %13 = sbr.rel (0) target = $region13
  $region12: #{basic_block_forward.3} parent=0 // pred_region
    _
  $region13: #{basic_block_forward.3} parent=0 // pred_fallthru
    _
  %v14 = vld [vmem:[%s0] sm:$0xff]
  %v15 = vld [vmem:[%s0 + $0x8] sm:$0xff]
  %v16 = vld [vmem:[%s0 + $0x10] sm:$0xff]
  %v17 = vld [vmem:[%s0 + $0x18] sm:$0xff]
  %v18 = vld [vmem:[%s0 + $0x20] sm:$0xff]
  %v19 = vld [vmem:[%s0 + $0x28] sm:$0xff]
  %v20 = vld [vmem:[%s0 + $0x30] sm:$0xff]
  %v21 = vld [vmem:[%s0 + $0x38] sm:$0xff]
  %v22 = vld [vmem:[%s0 + $0x40] sm:$0xff]
  %v23 = vld [vmem:[%s0 + $0x48] sm:$0xff]
  %v24 = vld [vmem:[%s0 + $0x50] sm:$0xff]
  %v25 = vld [vmem:[%s0 + $0x58] sm:$0xff]
  %v26 = vld [vmem:[%s0 + $0x60] sm:$0xff]
  %v27 = vld [vmem:[%s0 + $0x68] sm:$0xff]
  %v28 = vld [vmem:[%s0 + $0x70] sm:$0xff]
  %v29 = vld [vmem:[%s0 + $0x78] sm:$0xff]
  %v30 = vld [vmem:[%s0 + $0x80] sm:$0xff]
  %v31 = vld [vmem:[%s0 + $0x88] sm:$0xff]
  %v32 = vld [vmem:[%s0 + $0x90] sm:$0xff]
  %v33 = vld [vmem:[%s0 + $0x98] sm:$0xff]
  %v34 = vld [vmem:[%s0 + $0xa0] sm:$0xff]
  %v35 = vld [vmem:[%s0 + $0xa8] sm:$0xff]
  %v36 = vld [vmem:[%s0 + $0xb0] sm:$0xff]
  %v37 = vld [vmem:[%s0 + $0xb8] sm:$0xff]
  %v38 = vld [vmem:[%s0 + $0xc0] sm:$0xff]
  %v39 = vld [vmem:[%s0 + $0xc8] sm:$0xff]
  %v40 = vld [vmem:[%s0 + $0xd0] sm:$0xff]
  %v41 = vld [vmem:[%s0 + $0xd8] sm:$0xff]
  %v42 = vld [vmem:[%s0 + $0xe0] sm:$0xff]
  %v43 = vld [vmem:[%s0 + $0xe8] sm:$0xff]
  %v44 = vld [vmem:[%s0 + $0xf0] sm:$0xff]
  %v45 = vld [vmem:[%s0 + $0xf8] sm:$0xff]
  %v46 = vld [vmem:[%s1] sm:$0xff]
  %v47 = vld [vmem:[%s1 + $0x8] sm:$0xff]
  %v48 = vld [vmem:[%s1 + $0x10] sm:$0xff]
  %v49 = vld [vmem:[%s1 + $0x18] sm:$0xff]
  %v50 = vld [vmem:[%s1 + $0x20] sm:$0xff]
  %v51 = vld [vmem:[%s1 + $0x28] sm:$0xff]
  %v52 = vld [vmem:[%s1 + $0x30] sm:$0xff]
  %v53 = vld [vmem:[%s1 + $0x38] sm:$0xff]
  %v54 = vld [vmem:[%s1 + $0x40] sm:$0xff]
  %v55 = vld [vmem:[%s1 + $0x48] sm:$0xff]
  %v56 = vld [vmem:[%s1 + $0x50] sm:$0xff]
  %v57 = vld [vmem:[%s1 + $0x58] sm:$0xff]
  %v58 = vld [vmem:[%s1 + $0x60] sm:$0xff]
  %v59 = vld [vmem:[%s1 + $0x68] sm:$0xff]
  %v60 = vld [vmem:[%s1 + $0x70] sm:$0xff]
  %v61 = vld [vmem:[%s1 + $0x78] sm:$0xff]
  %v62 = vld [vmem:[%s1 + $0x80] sm:$0xff]
  %v63 = vld [vmem:[%s1 + $0x88] sm:$0xff]
  %v64 = vld [vmem:[%s1 + $0x90] sm:$0xff]
  %v65 = vld [vmem:[%s1 + $0x98] sm:$0xff]
  %v66 = vld [vmem:[%s1 + $0xa0] sm:$0xff]
  %v67 = vld [vmem:[%s1 + $0xa8] sm:$0xff]
  %v68 = vld [vmem:[%s1 + $0xb0] sm:$0xff]
  %v69 = vld [vmem:[%s1 + $0xb8] sm:$0xff]
  %v70 = vld [vmem:[%s1 + $0xc0] sm:$0xff]
  %v71 = vld [vmem:[%s1 + $0xc8] sm:$0xff]
  %v72 = vld [vmem:[%s1 + $0xd0] sm:$0xff]
  %v73 = vld [vmem:[%s1 + $0xd8] sm:$0xff]
  %v74 = vld [vmem:[%s1 + $0xe0] sm:$0xff]
  %v75 = vld [vmem:[%s1 + $0xe8] sm:$0xff]
  %v76 = vld [vmem:[%s1 + $0xf0] sm:$0xff]
  %v77 = vld [vmem:[%s1 + $0xf8] sm:$0xff]
  %v78 = vld [vmem:[%s2] sm:$0x1]
  %v80 = vlaneseq
  %v81 = vshrl.u32 %v80, 7
  %v82 = vsub.s32 0, %v81
  %v83 = vrot.slane %v78, %v82
  %85 = vmatprep.subr.mxu0 0.0
  %86 = vmatpush1.msra.mxu0 %v61
  %87 = vmatprep.subr.mxu0 0.0
  %88 = vmatpush1.msra.mxu0 %v60
  %89 = vmatprep.subr.mxu0 0.0
  %90 = vmatpush1.msra.mxu0 %v59
  %91 = vmatprep.subr.mxu0 0.0
  %92 = vmatpush1.msra.mxu0 %v58
  %93 = vmatprep.subr.mxu0 0.0
  %94 = vmatpush1.msra.mxu0 %v57
  %95 = vmatprep.subr.mxu0 0.0
  %96 = vmatpush1.msra.mxu0 %v56
  %97 = vmatprep.subr.mxu0 0.0
  %98 = vmatpush1.msra.mxu0 %v55
  %99 = vmatprep.subr.mxu0 0.0
  %100 = vmatpush1.msra.mxu0 %v54
  %101 = vmatprep.subr.mxu0 0.0
  %102 = vmatpush1.msra.mxu0 %v53
  %103 = vmatprep.subr.mxu0 0.0
  %104 = vmatpush1.msra.mxu0 %v52
  %105 = vmatprep.subr.mxu0 0.0
  %106 = vmatpush1.msra.mxu0 %v51
  %107 = vmatprep.subr.mxu0 0.0
  %108 = vmatpush1.msra.mxu0 %v50
  %109 = vmatprep.subr.mxu0 0.0
  %110 = vmatpush1.msra.mxu0 %v49
  %111 = vmatprep.subr.mxu0 0.0
  %112 = vmatpush1.msra.mxu0 %v48
  %113 = vmatprep.subr.mxu0 0.0
  %114 = vmatpush1.msra.mxu0 %v47
  %115 = vmatprep.subr.mxu0 0.0
  %116 = vmatpush1.msra.mxu0 %v46
  %117 = vmatprep.subr.mxu0 0.0
  %118 = vmatpush2.msra.mxu0 %v77
  %119 = vmatprep.subr.mxu0 0.0
  %120 = vmatpush2.msra.mxu0 %v76
  %121 = vmatprep.subr.mxu0 0.0
  %122 = vmatpush2.msra.mxu0 %v75
  %123 = vmatprep.subr.mxu0 0.0
  %124 = vmatpush2.msra.mxu0 %v74
  %125 = vmatprep.subr.mxu0 0.0
  %126 = vmatpush2.msra.mxu0 %v73
  %127 = vmatprep.subr.mxu0 0.0
  %128 = vmatpush2.msra.mxu0 %v72
  %129 = vmatprep.subr.mxu0 0.0
  %130 = vmatpush2.msra.mxu0 %v71
  %131 = vmatprep.subr.mxu0 0.0
  %132 = vmatpush2.msra.mxu0 %v70
  %133 = vmatprep.subr.mxu0 0.0
  %134 = vmatpush2.msra.mxu0 %v69
  %135 = vmatprep.subr.mxu0 0.0
  %136 = vmatpush2.msra.mxu0 %v68
  %137 = vmatprep.subr.mxu0 0.0
  %138 = vmatpush2.msra.mxu0 %v67
  %139 = vmatprep.subr.mxu0 0.0
  %140 = vmatpush2.msra.mxu0 %v66
  %141 = vmatprep.subr.mxu0 0.0
  %142 = vmatpush2.msra.mxu0 %v65
  %143 = vmatprep.subr.mxu0 0.0
  %144 = vmatpush2.msra.mxu0 %v64
  %145 = vmatprep.subr.mxu0 0.0
  %146 = vmatpush2.msra.mxu0 %v63
  %147 = vmatprep.subr.mxu0 0.0
  %148 = vmatpush2.msra.mxu0 %v62
  %149 = vmatprep.mubr.f32.mxu0 %v15
  %150 = vmatmul.mubr.f32.gmra.mxu0 %v14
  %v151 = vpop.f32.mrf.mxu0
  %v152 = vadd.f32 %v83, %v151
  %v153 = vpop.f32.mrf.mxu0
  %154 = vmatprep.mubr.f32.mxu0 %v17
  %155 = vmatmul.mubr.f32.gmra.mxu0 %v16
  %v156 = vpop.f32.mrf.mxu0
  %v157 = vadd.f32 %v83, %v156
  %v158 = vpop.f32.mrf.mxu0
  %159 = vmatprep.mubr.f32.mxu0 %v19
  %160 = vmatmul.mubr.f32.gmra.mxu0 %v18
  %v161 = vpop.f32.mrf.mxu0
  %v162 = vadd.f32 %v83, %v161
  %v163 = vpop.f32.mrf.mxu0
  %164 = vmatprep.mubr.f32.mxu0 %v21
  %165 = vmatmul.mubr.f32.gmra.mxu0 %v20
  %v166 = vpop.f32.mrf.mxu0
  %v167 = vadd.f32 %v83, %v166
  %v168 = vpop.f32.mrf.mxu0
  %169 = vmatprep.mubr.f32.mxu0 %v23
  %170 = vmatmul.mubr.f32.gmra.mxu0 %v22
  %v171 = vpop.f32.mrf.mxu0
  %v172 = vadd.f32 %v83, %v171
  %v173 = vpop.f32.mrf.mxu0
  %174 = vmatprep.mubr.f32.mxu0 %v25
  %175 = vmatmul.mubr.f32.gmra.mxu0 %v24
  %v176 = vpop.f32.mrf.mxu0
  %v177 = vadd.f32 %v83, %v176
  %v178 = vpop.f32.mrf.mxu0
  %179 = vmatprep.mubr.f32.mxu0 %v27
  %180 = vmatmul.mubr.f32.gmra.mxu0 %v26
  %v181 = vpop.f32.mrf.mxu0
  %v182 = vadd.f32 %v83, %v181
  %v183 = vpop.f32.mrf.mxu0
  %184 = vmatprep.mubr.f32.mxu0 %v29
  %185 = vmatmul.mubr.f32.gmra.mxu0 %v28
  %v186 = vpop.f32.mrf.mxu0
  %v187 = vadd.f32 %v83, %v186
  %v188 = vpop.f32.mrf.mxu0
  %189 = vmatprep.mubr.f32.mxu0 %v31
  %190 = vmatmul.mubr.f32.gmra.mxu0 %v30
  %v191 = vpop.f32.mrf.mxu0
  %v192 = vadd.f32 %v83, %v191
  %v193 = vpop.f32.mrf.mxu0
  %194 = vmatprep.mubr.f32.mxu0 %v33
  %195 = vmatmul.mubr.f32.gmra.mxu0 %v32
  %v196 = vpop.f32.mrf.mxu0
  %v197 = vadd.f32 %v83, %v196
  %v198 = vpop.f32.mrf.mxu0
  %199 = vmatprep.mubr.f32.mxu0 %v35
  %200 = vmatmul.mubr.f32.gmra.mxu0 %v34
  %v201 = vpop.f32.mrf.mxu0
  %v202 = vadd.f32 %v83, %v201
  %v203 = vpop.f32.mrf.mxu0
  %204 = vmatprep.mubr.f32.mxu0 %v37
  %205 = vmatmul.mubr.f32.gmra.mxu0 %v36
  %v206 = vpop.f32.mrf.mxu0
  %v207 = vadd.f32 %v83, %v206
  %v208 = vpop.f32.mrf.mxu0
  %209 = vmatprep.mubr.f32.mxu0 %v39
  %210 = vmatmul.mubr.f32.gmra.mxu0 %v38
  %v211 = vpop.f32.mrf.mxu0
  %v212 = vadd.f32 %v83, %v211
  %v213 = vpop.f32.mrf.mxu0
  %214 = vmatprep.mubr.f32.mxu0 %v41
  %215 = vmatmul.mubr.f32.gmra.mxu0 %v40
  %v216 = vpop.f32.mrf.mxu0
  %v217 = vadd.f32 %v83, %v216
  %v218 = vpop.f32.mrf.mxu0
  %219 = vmatprep.mubr.f32.mxu0 %v43
  %220 = vmatmul.mubr.f32.gmra.mxu0 %v42
  %v221 = vpop.f32.mrf.mxu0
  %v222 = vadd.f32 %v83, %v221
  %v223 = vpop.f32.mrf.mxu0
  %224 = vmatprep.mubr.f32.mxu0 %v45
  %225 = vmatmul.mubr.f32.gmra.mxu0 %v44
  %v226 = vpop.f32.mrf.mxu0
  %v227 = vadd.f32 %v83, %v226
  %v228 = vpop.f32.mrf.mxu0
  %229 = vdwg.mxu0
  %v230 = vmax.f32 %v152, 0.0
  %v231 = vmax.f32 %v157, 0.0
  %v232 = vmax.f32 %v162, 0.0
  %v233 = vmax.f32 %v167, 0.0
  %v234 = vmax.f32 %v172, 0.0
  %v235 = vmax.f32 %v177, 0.0
  %v236 = vmax.f32 %v182, 0.0
  %v237 = vmax.f32 %v187, 0.0
  %v238 = vmax.f32 %v192, 0.0
  %v239 = vmax.f32 %v197, 0.0
  %v240 = vmax.f32 %v202, 0.0
  %v241 = vmax.f32 %v207, 0.0
  %v242 = vmax.f32 %v212, 0.0
  %v243 = vmax.f32 %v217, 0.0
  %v244 = vmax.f32 %v222, 0.0
  %v245 = vmax.f32 %v227, 0.0
  %246 = vst [vmem:[%s3] sm:$0xff] %v230
  %247 = vst [vmem:[%s3 + $0x8] sm:$0xff] %v231
  %248 = vst [vmem:[%s3 + $0x10] sm:$0xff] %v232
  %249 = vst [vmem:[%s3 + $0x18] sm:$0xff] %v233
  %250 = vst [vmem:[%s3 + $0x20] sm:$0xff] %v234
  %251 = vst [vmem:[%s3 + $0x28] sm:$0xff] %v235
  %252 = vst [vmem:[%s3 + $0x30] sm:$0xff] %v236
  %253 = vst [vmem:[%s3 + $0x38] sm:$0xff] %v237
  %254 = vst [vmem:[%s3 + $0x40] sm:$0xff] %v238
  %255 = vst [vmem:[%s3 + $0x48] sm:$0xff] %v239
  %256 = vst [vmem:[%s3 + $0x50] sm:$0xff] %v240
  %257 = vst [vmem:[%s3 + $0x58] sm:$0xff] %v241
  %258 = vst [vmem:[%s3 + $0x60] sm:$0xff] %v242
  %259 = vst [vmem:[%s3 + $0x68] sm:$0xff] %v243
  %260 = vst [vmem:[%s3 + $0x70] sm:$0xff] %v244
  %261 = vst [vmem:[%s3 + $0x78] sm:$0xff] %v245
  // Predicated region
  $region14: #{basic_block_forward.3} parent=0 // pred_check
    _
  $region15: #{basic_block_forward.3} parent=0 // pred_check_branch
    %263 = sbr.rel (0) target = $region17
  $region16: #{basic_block_forward.3} parent=0 // pred_region
    _
  $region17: #{basic_block_forward.3} parent=0 // pred_fallthru
    _
  // Predicated region
  $region18: #{basic_block_forward.3} parent=0 // pred_check
    _
  $region19: #{basic_block_forward.3} parent=0 // pred_check_branch
    %265 = sbr.rel (0) target = $region21
  $region20: #{basic_block_forward.3} parent=0 // pred_region
    _
  $region21: #{basic_block_forward.3} parent=0 // pred_fallthru
    _

</llo_original>
